<compile_context>
chip_gen: v6e
topology: v6e:2x2x1
jax: 0.10.0
libtpu: 0.0.40
codegen_flags: <defaults>
</compile_context>

<pallas_src>
import functools

import jax
import jax.numpy as jnp
from jax.experimental import pallas as pl
from jax.experimental.pallas import tpu as pltpu


# ----------------------------------------------------------------------------
# Kernel body
# ----------------------------------------------------------------------------
def _gat_self_output_kernel(x_ref, wt_ref, b_ref, g_ref, beta_ref, o_ref, *,
                            eps, layer_norm, dim):
    # x_ref: (TM, D), wt_ref: (D, D) in [dim_in, dim_out] layout (pre-transposed
    # in the wrapper so the MXU contraction needs no in-kernel relayout),
    # b/g/beta: (1, D) f32, o_ref: (TM, D).
    x = x_ref[...]
    # x @ W^T expressed as x @ W_t -> straight MXU matmul, f32 accumulation.
    h = jnp.dot(x, wt_ref[...], preferred_element_type=jnp.float32)
    h = h + b_ref[...]
    # TODO(synk): dropout is identity in eval mode; training-mode dropout would
    # need pltpu.prng_seed/prng_random_bits masking here.
    h = jnp.maximum(h, 0.0)  # ReLU
    if layer_norm:
        inv_d = jnp.float32(1.0 / dim)
        # Two-pass statistics (subtract mean first) — matches the reference
        # numerics and avoids E[h^2] - mean^2 cancellation.
        mean = jnp.sum(h, axis=-1, keepdims=True) * inv_d
        c = h - mean
        var = jnp.sum(c * c, axis=-1, keepdims=True) * inv_d
        h = c * jax.lax.rsqrt(var + eps)
        h = h * g_ref[...] + beta_ref[...]
    o_ref[...] = h.astype(o_ref.dtype)


# ----------------------------------------------------------------------------
# Host-side helpers
# ----------------------------------------------------------------------------
def prepare_weight(weight, dtype=None):
    """One-time conversion of a PyTorch nn.Linear weight [dim_out, dim_in] to
    the MXU-friendly [dim_in, dim_out] layout (optionally cast, e.g. to bf16).
    Callers should cache the result across invocations."""
    wt = jnp.asarray(weight).T
    if dtype is not None:
        wt = wt.astype(dtype)
    return wt


def _tpu_hw_info():
    """(vmem_capacity_bytes, multi_tensorcore) with conservative fallbacks."""
    vmem_cap = 64 * 1024 * 1024          # v7x per-TC VMEM — safe lower bound
    multi_tc = False
    try:
        vmem_cap = int(pltpu.get_tpu_info().vmem_capacity_bytes)
    except Exception:
        pass
    try:
        kind = jax.devices()[0].device_kind.lower()
        # Chips whose grid "parallel" axes are sharded across >1 TensorCore.
        multi_tc = ("v4" in kind) or ("v5p" in kind) or ("v7" in kind) or ("tpu7" in kind)
    except Exception:
        pass
    return vmem_cap, multi_tc


def gat_self_output(x, weight, bias, gamma=None, beta=None, *, eps=1e-12,
                    layer_norm=True, weight_is_transposed=False,
                    vmem_target_bytes=None):
    """x: [..., dim]; weight: [dim_out, dim_in] (PyTorch layout) unless
    weight_is_transposed=True, in which case it is the cached [dim_in, dim_out]
    array from prepare_weight()."""
    orig_shape = x.shape
    dim = orig_shape[-1]
    x2d = x.reshape(-1, dim)
    m = x2d.shape[0]
    dtype = x2d.dtype
    isz = jnp.dtype(dtype).itemsize

    # Weight in [dim_in, dim_out] layout, matching the activation dtype.
    wt = jnp.asarray(weight) if weight_is_transposed else jnp.asarray(weight).T
    if wt.dtype != dtype:
        wt = wt.astype(dtype)

    # Small per-feature params stay in f32 (LN math is f32 in-kernel).
    b2d = jnp.asarray(bias, jnp.float32).reshape(1, dim)
    g2d = (jnp.ones((1, dim), jnp.float32) if gamma is None
           else jnp.asarray(gamma, jnp.float32).reshape(1, dim))
    beta2d = (jnp.zeros((1, dim), jnp.float32) if beta is None
              else jnp.asarray(beta, jnp.float32).reshape(1, dim))

    vmem_cap, multi_tc = _tpu_hw_info()

    # ---- Row tile sizing -----------------------------------------------------
    # Budget ~= 1/4 of physical VMEM (capped at 24 MiB); it must cover the
    # double-buffered x and out row-tiles AND the (double-buffered) weight.
    budget = vmem_target_bytes or max(4 << 20, min(24 << 20, vmem_cap // 4))
    w_bytes = 2 * dim * dim * isz            # W buffers (constant index map)
    row_bytes = 4 * dim * isz                # x-tile + out-tile, double-buffered
    sub = 16 if isz < 4 else 8               # sublane packing (bf16 packs 16 rows)
    tile_m = int(max(0, budget - w_bytes) // row_bytes)
    tile_m = max(sub, min(1024, tile_m))
    tile_m -= tile_m % sub
    m_round = ((m + sub - 1) // sub) * sub
    tile_m = min(tile_m, m_round)
    # Only split the row axis to get >=2 grid steps on multi-TensorCore parts
    # (v4/v5p/v7x); on 1-TC chips a single large tile is strictly better.
    if multi_tc and pl.cdiv(m, tile_m) < 2 and m_round >= 2 * sub:
        tile_m = max(sub, ((m_round // 2) // sub) * sub)
    grid_m = pl.cdiv(m, tile_m)              # ragged last tile handled in-kernel

    # ---- VMEM limit from the actual footprint (with headroom, capped) --------
    footprint = (2 * tile_m * dim * isz      # x tiles (double-buffered)
                 + 2 * tile_m * dim * isz    # out tiles (double-buffered)
                 + 2 * dim * dim * isz       # W buffers
                 + 2 * 3 * dim * 4)          # bias/gamma/beta (f32)
    vmem_limit = int(min(vmem_cap, max(footprint + (4 << 20), 16 << 20)))

    kernel = functools.partial(_gat_self_output_kernel, eps=eps,
                               layer_norm=layer_norm, dim=dim)

    cost = pl.CostEstimate(
        flops=2 * m * dim * dim,
        transcendentals=m if layer_norm else 0,
        bytes_accessed=2 * m * dim * isz + dim * dim * isz + 3 * dim * 4,
    )

    out = pl.pallas_call(
        kernel,
        out_shape=jax.ShapeDtypeStruct((m, dim), dtype),
        grid_spec=pltpu.PrefetchScalarGridSpec(
            num_scalar_prefetch=0,
            grid=(grid_m,),
            in_specs=[
                pl.BlockSpec((tile_m, dim), lambda i: (i, 0)),  # x rows
                pl.BlockSpec((dim, dim), lambda i: (0, 0)),     # W^T (resident)
                pl.BlockSpec((1, dim), lambda i: (0, 0)),       # bias
                pl.BlockSpec((1, dim), lambda i: (0, 0)),       # gamma
                pl.BlockSpec((1, dim), lambda i: (0, 0)),       # beta
            ],
            out_specs=pl.BlockSpec((tile_m, dim), lambda i: (i, 0)),
        ),
        compiler_params=pltpu.CompilerParams(
            dimension_semantics=("parallel",),
            vmem_limit_bytes=vmem_limit,
        ),
        cost_estimate=cost,
    )(x2d, wt, b2d, g2d, beta2d)

    return out.reshape(orig_shape)


# ----------------------------------------------------------------------------
# Pure-JAX reference (matches the PyTorch forward in eval mode)
# ----------------------------------------------------------------------------
def _reference(x, weight, bias, gamma, beta, eps=1e-12, layer_norm=True):
    h = jnp.einsum("...i,oi->...o", x, weight) + bias
    h = jnp.maximum(h, 0.0)
    if layer_norm:
        mean = jnp.mean(h, axis=-1, keepdims=True)
        var = jnp.mean(jnp.square(h - mean), axis=-1, keepdims=True)
        h = (h - mean) * jax.lax.rsqrt(var + eps)
        h = h * gamma + beta
    return h


if __name__ == "__main__":
    batch, seq, dim = 2, 8, 32   # config.dim = 32

    key = jax.random.PRNGKey(0)
    k_x, k_w, k_b = jax.random.split(key, 3)

    x = jax.random.normal(k_x, (batch, seq, dim), dtype=jnp.float32)
    weight = jax.random.normal(k_w, (dim, dim), dtype=jnp.float32) * (1.0 / dim ** 0.5)
    bias = jax.random.normal(k_b, (dim,), dtype=jnp.float32) * 0.01
    gamma = jnp.ones((dim,), dtype=jnp.float32)
    beta = jnp.zeros((dim,), dtype=jnp.float32)

    ref = _reference(x, weight, bias, gamma, beta, eps=1e-12, layer_norm=True)

    # f32 path (PyTorch-layout weight; wrapper does the one-time transpose).
    out = gat_self_output(x, weight, bias, gamma, beta, eps=1e-12, layer_norm=True)
    out = jax.block_until_ready(out)
    assert out.shape == x.shape
    assert jnp.allclose(out, ref, atol=1e-4, rtol=1e-4), "f32 mismatch vs reference"

    # bf16 fast path with a cached, pre-transposed weight (v6e/v7x bandwidth win).
    wt_cached = prepare_weight(weight, jnp.bfloat16)
    out_bf16 = gat_self_output(x.astype(jnp.bfloat16), wt_cached, bias, gamma, beta,
                               eps=1e-12, layer_norm=True, weight_is_transposed=True)
    out_bf16 = jax.block_until_ready(out_bf16)
    assert out_bf16.shape == x.shape and out_bf16.dtype == jnp.bfloat16
    assert jnp.allclose(out_bf16.astype(jnp.float32), ref, atol=8e-2, rtol=8e-2), \
        "bf16 mismatch vs reference"

    print("KERNEL_OK")
</pallas_src>

<mosaic_0001>
module attributes {stable_mosaic.version = 11 : i64} {
  func.func @_gat_self_output_kernel(%arg0: i32, %arg1: memref<16x32xf32, #tpu.memory_space<vmem>>, %arg2: memref<32x32xf32, #tpu.memory_space<vmem>>, %arg3: memref<1x32xf32, #tpu.memory_space<vmem>>, %arg4: memref<1x32xf32, #tpu.memory_space<vmem>>, %arg5: memref<1x32xf32, #tpu.memory_space<vmem>>, %arg6: memref<16x32xf32, #tpu.memory_space<vmem>>) attributes {dimension_semantics = [#tpu.dimension_semantics<parallel>], iteration_bounds = array<i64: 1>, scalar_prefetch = 0 : i64, scratch_operands = 0 : i64, tpu.core_type = #tpu.core_type<tc>, window_params = [{transform_indices = @transform_0, window_bounds = array<i64: 16, 32>}, {pipeline_mode = #tpu.pipeline_mode<synchronous>, transform_indices = @transform_1, window_bounds = array<i64: 32, 32>}, {pipeline_mode = #tpu.pipeline_mode<synchronous>, transform_indices = @transform_2, window_bounds = array<i64: 1, 32>}, {pipeline_mode = #tpu.pipeline_mode<synchronous>, transform_indices = @transform_3, window_bounds = array<i64: 1, 32>}, {pipeline_mode = #tpu.pipeline_mode<synchronous>, transform_indices = @transform_4, window_bounds = array<i64: 1, 32>}, {transform_indices = @transform_5, window_bounds = array<i64: 16, 32>}]} {
    %c0 = arith.constant 0 : index
    %c0_0 = arith.constant 0 : index
    %0 = vector.load %arg1[%c0, %c0_0] : memref<16x32xf32, #tpu.memory_space<vmem>>, vector<16x32xf32>
    %c0_1 = arith.constant 0 : index
    %c0_2 = arith.constant 0 : index
    %1 = vector.load %arg2[%c0_1, %c0_2] : memref<32x32xf32, #tpu.memory_space<vmem>>, vector<32x32xf32>
    %cst = arith.constant dense<0.000000e+00> : vector<16x32xf32>
    %2 = tpu.matmul %0, %1, %cst {dimension_numbers = #tpu.dot_dimension_numbers<[1], [0], [0], [1], [0, 0, 1, 1], [], []>} : vector<16x32xf32>, vector<32x32xf32>, vector<16x32xf32> -> vector<16x32xf32>
    %c0_3 = arith.constant 0 : index
    %c0_4 = arith.constant 0 : index
    %3 = vector.load %arg3[%c0_3, %c0_4] : memref<1x32xf32, #tpu.memory_space<vmem>>, vector<1x32xf32>
    %4 = vector.broadcast %3 : vector<1x32xf32> to vector<16x32xf32>
    %5 = arith.addf %2, %4 : vector<16x32xf32>
    %cst_5 = arith.constant 0.000000e+00 : f32
    %6 = vector.broadcast %cst_5 : f32 to vector<16x32xf32>
    %7 = arith.maximumf %5, %6 : vector<16x32xf32>
    %cst_6 = arith.constant dense<0.000000e+00> : vector<16xf32>
    %8 = vector.multi_reduction <add>, %7, %cst_6 [1] : vector<16x32xf32> to vector<16xf32>
    %9 = vector.shape_cast %8 : vector<16xf32> to vector<16x1xf32>
    %cst_7 = arith.constant 3.125000e-02 : f32
    %10 = vector.broadcast %cst_7 : f32 to vector<16x1xf32>
    %11 = arith.mulf %9, %10 : vector<16x1xf32>
    %12 = vector.broadcast %11 : vector<16x1xf32> to vector<16x32xf32>
    %13 = arith.subf %7, %12 : vector<16x32xf32>
    %14 = arith.mulf %13, %13 : vector<16x32xf32>
    %cst_8 = arith.constant dense<0.000000e+00> : vector<16xf32>
    %15 = vector.multi_reduction <add>, %14, %cst_8 [1] : vector<16x32xf32> to vector<16xf32>
    %16 = vector.shape_cast %15 : vector<16xf32> to vector<16x1xf32>
    %cst_9 = arith.constant 3.125000e-02 : f32
    %17 = vector.broadcast %cst_9 : f32 to vector<16x1xf32>
    %18 = arith.mulf %16, %17 : vector<16x1xf32>
    %cst_10 = arith.constant 9.99999996E-13 : f32
    %19 = vector.broadcast %cst_10 : f32 to vector<16x1xf32>
    %20 = arith.addf %18, %19 : vector<16x1xf32>
    %21 = math.rsqrt %20 : vector<16x1xf32>
    %22 = vector.broadcast %21 : vector<16x1xf32> to vector<16x32xf32>
    %23 = arith.mulf %13, %22 : vector<16x32xf32>
    %c0_11 = arith.constant 0 : index
    %c0_12 = arith.constant 0 : index
    %24 = vector.load %arg4[%c0_11, %c0_12] : memref<1x32xf32, #tpu.memory_space<vmem>>, vector<1x32xf32>
    %25 = vector.broadcast %24 : vector<1x32xf32> to vector<16x32xf32>
    %26 = arith.mulf %23, %25 : vector<16x32xf32>
    %c0_13 = arith.constant 0 : index
    %c0_14 = arith.constant 0 : index
    %27 = vector.load %arg5[%c0_13, %c0_14] : memref<1x32xf32, #tpu.memory_space<vmem>>, vector<1x32xf32>
    %28 = vector.broadcast %27 : vector<1x32xf32> to vector<16x32xf32>
    %29 = arith.addf %26, %28 : vector<16x32xf32>
    %c0_15 = arith.constant 0 : index
    %c0_16 = arith.constant 0 : index
    %30 = vector.load %arg6[%c0_15, %c0_16] : memref<16x32xf32, #tpu.memory_space<vmem>>, vector<16x32xf32>
    tpu.vector_store %arg6[%c0_15, %c0_16], %29 {strides = array<i32>} : memref<16x32xf32, #tpu.memory_space<vmem>>, vector<16x32xf32>,
    return
  }
  func.func @transform_0(%arg0: i32) -> (i32, i32) {
    %c0_i32 = arith.constant 0 : i32
    %c0_i32_0 = arith.constant 0 : i32
    return %arg0, %c0_i32 : i32, i32
  }
  func.func @transform_1(%arg0: i32) -> (i32, i32) {
    %c0_i32 = arith.constant 0 : i32
    %c0_i32_0 = arith.constant 0 : i32
    %c0_i32_1 = arith.constant 0 : i32
    return %c0_i32, %c0_i32_0 : i32, i32
  }
  func.func @transform_2(%arg0: i32) -> (i32, i32) {
    %c0_i32 = arith.constant 0 : i32
    %c0_i32_0 = arith.constant 0 : i32
    %c0_i32_1 = arith.constant 0 : i32
    return %c0_i32, %c0_i32_0 : i32, i32
  }
  func.func @transform_3(%arg0: i32) -> (i32, i32) {
    %c0_i32 = arith.constant 0 : i32
    %c0_i32_0 = arith.constant 0 : i32
    %c0_i32_1 = arith.constant 0 : i32
    return %c0_i32, %c0_i32_0 : i32, i32
  }
  func.func @transform_4(%arg0: i32) -> (i32, i32) {
    %c0_i32 = arith.constant 0 : i32
    %c0_i32_0 = arith.constant 0 : i32
    %c0_i32_1 = arith.constant 0 : i32
    return %c0_i32, %c0_i32_0 : i32, i32
  }
  func.func @transform_5(%arg0: i32) -> (i32, i32) {
    %c0_i32 = arith.constant 0 : i32
    %c0_i32_0 = arith.constant 0 : i32
    return %arg0, %c0_i32 : i32, i32
  }
}

</mosaic_0001>

<llo_original>
// kernel: tpu_custom_call.1
$region0: #{tpu_custom_call.1}
  #allocation0 [shape = 'u32[]', space=smem, size = 0x4, offset = 0x4, fixed_abs, tag = 'smem constant byte address 0x4 - core index']
  #allocation1 [shape = 'u32[144,128]{1,0:T(1,128)}', space=vmem, size = 0x12000, scoped, tag = 'internal scratch']
  %s0 = inlined_call_operand.hbm [shape: f32[16,32], index: 0, kind: input, shape index: {}]
  %s1 = inlined_call_operand.hbm [shape: f32[32,32], index: 1, kind: input, shape index: {}]
  %s2 = inlined_call_operand.vmem [shape: f32[1,32], index: 2, kind: input, shape index: {}]
  %s3 = inlined_call_operand.vmem [shape: f32[1,32], index: 3, kind: input, shape index: {}]
  %s4 = inlined_call_operand.vmem [shape: f32[1,32], index: 4, kind: input, shape index: {}]
  %s5 = inlined_call_operand.hbm [shape: f32[16,32], index: 5, kind: output, shape index: {}]
  %s6 = sld [smem:[#allocation0]]
  $region38: #{tpu_custom_call.1} parent=0
    _
  %s8 = ssub.s32 1, %s6
  %s9 = scalar_select 0, %s8, %s6
  $region1: #{tpu_custom_call.1} parent=0
    #allocation2 [shape = 'u8[8192]{0}', space=vmem, size = 0x2000, scoped, tag = 'input window, operand 0, single buffered']
    #allocation3 [shape = 's32[1]{0}', space=sflag, size = 0x4, scoped, tag = 'scoped memory for tpu_custom_call.1']
    #allocation4 [shape = 's32[1]{0}', space=sflag, size = 0x4, scoped, tag = 'scoped memory for tpu_custom_call.1']
    #allocation5 [shape = 'u8[16384]{0}', space=vmem, size = 0x4000, scoped, tag = 'input window, operand 1, single buffered']
    #allocation6 [shape = 's32[1]{0}', space=sflag, size = 0x4, scoped, tag = 'scoped memory for tpu_custom_call.1']
    #allocation7 [shape = 'u8[8192]{0}', space=vmem, size = 0x2000, scoped, tag = 'output window, operand 0, single buffered']
    %10 = vsyncpa [#allocation3], 0
    %11 = vsyncpa [#allocation6], 0
    %12 = vsyncpa [#allocation4], 0
    // Predicated region
    $region2: #{tpu_custom_call.1} parent=1 // pred_check
      _
    $region3: #{tpu_custom_call.1} parent=1 // pred_check_branch
      %14 = sbr.rel (0) target = $region5
    $region4: #{tpu_custom_call.1} parent=1 // pred_region
      %s16 = ssub.s32 256, 256
      %17 = vsyncadd [#allocation3], %s16
      %s18 = sshll.u32 [#allocation2], 4
      %s19 = int_to_ptr.vmem [resolvable:$true] %s18
      %24 = dma.hbm_to_vmem [thread:$0]  %s0, 256, %s19, [#allocation3], 128, 128, 8
    $region5: #{tpu_custom_call.1} parent=1 // pred_fallthru
      _
    // Predicated region
    $region6: #{tpu_custom_call.1} parent=1 // pred_check
      _
    $region7: #{tpu_custom_call.1} parent=1 // pred_check_branch
      %26 = sbr.rel (0) target = $region9
    $region8: #{tpu_custom_call.1} parent=1 // pred_region
      %s28 = ssub.s32 512, 512
      %29 = vsyncadd [#allocation6], %s28
      %s30 = sshll.u32 [#allocation5], 4
      %s31 = int_to_ptr.vmem [resolvable:$true] %s30
      %36 = dma.hbm_to_vmem [thread:$0]  %s1, 512, %s31, [#allocation6], 128, 128, 8
    $region9: #{tpu_custom_call.1} parent=1 // pred_fallthru
      _
    // Predicated region
    $region10: #{tpu_custom_call.1} parent=1 // pred_check
      _
    $region11: #{tpu_custom_call.1} parent=1 // pred_check_branch
      %38 = sbr.rel (0) target = $region13
    $region12: #{tpu_custom_call.1} parent=1 // pred_region
      _
    $region13: #{tpu_custom_call.1} parent=1 // pred_fallthru
      _
    // Predicated region
    $region14: #{tpu_custom_call.1} parent=1 // pred_check
      _
    $region15: #{tpu_custom_call.1} parent=1 // pred_check_branch
      %40 = sbr.rel (0) target = $region17
    $region16: #{tpu_custom_call.1} parent=1 // pred_region
      _
    $region17: #{tpu_custom_call.1} parent=1 // pred_fallthru
      _
    // Predicated region
    $region18: #{tpu_custom_call.1} parent=1 // pred_check
      _
    $region19: #{tpu_custom_call.1} parent=1 // pred_check_branch
      %42 = sbr.rel (0) target = $region21
    $region20: #{tpu_custom_call.1} parent=1 // pred_region
      _
    $region21: #{tpu_custom_call.1} parent=1 // pred_fallthru
      _
    // Predicated region
    $region22: #{tpu_custom_call.1} parent=1 // pred_check
      _
    $region23: #{tpu_custom_call.1} parent=1 // pred_check_branch
      %44 = sbr.rel (0) target = $region25
    $region24: #{tpu_custom_call.1} parent=1 // pred_region
      %45 = dma.done [#allocation3], 256
    $region25: #{tpu_custom_call.1} parent=1 // pred_fallthru
      _
    // Predicated region
    $region26: #{tpu_custom_call.1} parent=1 // pred_check
      _
    $region27: #{tpu_custom_call.1} parent=1 // pred_check_branch
      %47 = sbr.rel (0) target = $region29
    $region28: #{tpu_custom_call.1} parent=1 // pred_region
      %48 = dma.done [#allocation6], 512
    $region29: #{tpu_custom_call.1} parent=1 // pred_fallthru
      _
    %v49 = vld [vmem:[#allocation2] sm:$0xff]
    %v50 = vld [vmem:[#allocation2 + $0x8] sm:$0xff]
    %v51 = vld [vmem:[#allocation5] sm:$0xff]
    %v52 = vld [vmem:[#allocation5 + $0x8] sm:$0xff]
    %v53 = vld [vmem:[#allocation5 + $0x10] sm:$0xff]
    %v54 = vld [vmem:[#allocation5 + $0x18] sm:$0xff]
    %v55 = vld [vmem:[%s2] sm:$0x1]
    %v57 = vlaneseq
    %v58 = vshrl.u32 %v57, 7
    %v59 = vsub.s32 0, %v58
    %v60 = vrot.slane %v55, %v59
    %vm62 = vcmask 261120
    %v64 = vsel %vm62, %v49, 0
    %v67 = vsel %vm62, %v50, 0
    %69 = vmatprep.subr.mxu0 0.0
    %70 = vmatpush1.msra.mxu0 0.0
    %71 = vmatprep.subr.mxu0 0.0
    %72 = vmatpush1.msra.mxu0 0.0
    %73 = vmatprep.subr.mxu0 0.0
    %74 = vmatpush1.msra.mxu0 0.0
    %75 = vmatprep.subr.mxu0 0.0
    %76 = vmatpush1.msra.mxu0 0.0
    %77 = vmatprep.subr.mxu0 0.0
    %78 = vmatpush1.msra.mxu0 0.0
    %79 = vmatprep.subr.mxu0 0.0
    %80 = vmatpush1.msra.mxu0 0.0
    %81 = vmatprep.subr.mxu0 0.0
    %82 = vmatpush1.msra.mxu0 0.0
    %83 = vmatprep.subr.mxu0 0.0
    %84 = vmatpush1.msra.mxu0 0.0
    %85 = vmatprep.subr.mxu0 0.0
    %86 = vmatpush1.msra.mxu0 0.0
    %87 = vmatprep.subr.mxu0 0.0
    %88 = vmatpush1.msra.mxu0 0.0
    %89 = vmatprep.subr.mxu0 0.0
    %90 = vmatpush1.msra.mxu0 0.0
    %91 = vmatprep.subr.mxu0 0.0
    %92 = vmatpush1.msra.mxu0 0.0
    %93 = vmatprep.subr.mxu0 0.0
    %94 = vmatpush1.msra.mxu0 %v54
    %95 = vmatprep.subr.mxu0 0.0
    %96 = vmatpush1.msra.mxu0 %v53
    %97 = vmatprep.subr.mxu0 0.0
    %98 = vmatpush1.msra.mxu0 %v52
    %99 = vmatprep.subr.mxu0 0.0
    %100 = vmatpush1.msra.mxu0 %v51
    %101 = vmatprep.subr.mxu0 0.0
    %102 = vmatpush2.msra.mxu0 0.0
    %103 = vmatprep.subr.mxu0 0.0
    %104 = vmatpush2.msra.mxu0 0.0
    %105 = vmatprep.subr.mxu0 0.0
    %106 = vmatpush2.msra.mxu0 0.0
    %107 = vmatprep.subr.mxu0 0.0
    %108 = vmatpush2.msra.mxu0 0.0
    %109 = vmatprep.subr.mxu0 0.0
    %110 = vmatpush2.msra.mxu0 0.0
    %111 = vmatprep.subr.mxu0 0.0
    %112 = vmatpush2.msra.mxu0 0.0
    %113 = vmatprep.subr.mxu0 0.0
    %114 = vmatpush2.msra.mxu0 0.0
    %115 = vmatprep.subr.mxu0 0.0
    %116 = vmatpush2.msra.mxu0 0.0
    %117 = vmatprep.subr.mxu0 0.0
    %118 = vmatpush2.msra.mxu0 0.0
    %119 = vmatprep.subr.mxu0 0.0
    %120 = vmatpush2.msra.mxu0 0.0
    %121 = vmatprep.subr.mxu0 0.0
    %122 = vmatpush2.msra.mxu0 0.0
    %123 = vmatprep.subr.mxu0 0.0
    %124 = vmatpush2.msra.mxu0 0.0
    %125 = vmatprep.subr.mxu0 0.0
    %126 = vmatpush2.msra.mxu0 0.0
    %127 = vmatprep.subr.mxu0 0.0
    %128 = vmatpush2.msra.mxu0 0.0
    %129 = vmatprep.subr.mxu0 0.0
    %130 = vmatpush2.msra.mxu0 0.0
    %131 = vmatprep.subr.mxu0 0.0
    %132 = vmatpush2.msra.mxu0 0.0
    %133 = vmatprep.mubr.f32.mxu0 0.0
    %134 = vmatmul.mubr.f32.gmra.mxu0 %v64
    %v135 = vpop.f32.mrf.mxu0
    %v136 = vadd.f32 %v60, %v135
    %v137 = vpop.f32.mrf.mxu0
    %138 = vmatprep.mubr.f32.mxu0 0.0
    %139 = vmatmul.mubr.f32.gmra.mxu0 %v67
    %v140 = vpop.f32.mrf.mxu0
    %v141 = vadd.f32 %v60, %v140
    %v142 = vpop.f32.mrf.mxu0
    %143 = vdwg.mxu0
    %v144 = vmax.f32 %v136, 0.0
    %v145 = vmax.f32 %v141, 0.0
    %v146 = vsel %vm62, %v144, 0.0
    %147 = vadd.xlane.f32.xlu0 %v146
    %v148 = vpop.xlane.xlu0 %147
    %v149 = vsel %vm62, %v145, 0.0
    %150 = vadd.xlane.f32.xlu0 %v149
    %v151 = vpop.xlane.xlu0 %150
    %v152 = vmul.f32 %v148, 0.03125
    %v153 = vmul.f32 %v151, 0.03125
    %v154 = vsub.f32 %v144, %v152
    %v155 = vsub.f32 %v145, %v153
    %v156 = vmul.f32 %v154, %v154
    %v157 = vmul.f32 %v155, %v155
    %v158 = vsel %vm62, %v156, 0.0
    %159 = vadd.xlane.f32.xlu0 %v158
    %v160 = vpop.xlane.xlu0 %159
    %v161 = vsel %vm62, %v157, 0.0
    %162 = vadd.xlane.f32.xlu0 %v161
    %v163 = vpop.xlane.xlu0 %162
    %v164 = vmul.f32 %v160, 0.03125
    %v165 = vmul.f32 %v163, 0.03125
    %v166 = vadd.f32 %v164, 1e-12
    %v167 = vadd.f32 %v165, 1e-12
    %v168 = vrsqrt.pop %v166
    %v169 = vrsqrt.pop %v167
    %v170 = vmul.f32 %v154, %v168
    %v171 = vmul.f32 %v155, %v169
    %v172 = vld [vmem:[%s3] sm:$0x1]
    %v174 = vlaneseq
    %v175 = vshrl.u32 %v174, 7
    %v176 = vsub.s32 0, %v175
    %v177 = vrot.slane %v172, %v176
    %v179 = vmul.f32 %v170, %v177
    %v180 = vmul.f32 %v171, %v177
    %v181 = vld [vmem:[%s4] sm:$0x1]
    %v183 = vlaneseq
    %v184 = vshrl.u32 %v183, 7
    %v185 = vsub.s32 0, %v184
    %v186 = vrot.slane %v181, %v185
    %v188 = vadd.f32 %v179, %v186
    %v189 = vadd.f32 %v180, %v186
    %190 = vst.msk [vmem:[#allocation7] sm:$0xff] %vm62, %v188
    %191 = vst.msk [vmem:[#allocation7 + $0x8] sm:$0xff] %vm62, %v189
    // Predicated region
    $region30: #{tpu_custom_call.1} parent=1 // pred_check
      _
    $region31: #{tpu_custom_call.1} parent=1 // pred_check_branch
      %193 = sbr.rel (0) target = $region33
    $region32: #{tpu_custom_call.1} parent=1 // pred_region
      %s195 = ssub.s32 256, 256
      %196 = vsyncadd [#allocation4], %s195
      %s197 = sshll.u32 [#allocation7], 4
      %s198 = int_to_ptr.vmem [resolvable:$true] %s197
      %203 = dma.vmem_to_hbm [thread:$0]  %s198, 256, %s5, [#allocation4], 128, 128, 8
    $region33: #{tpu_custom_call.1} parent=1 // pred_fallthru
      _
    // Predicated region
    $region34: #{tpu_custom_call.1} parent=1 // pred_check
      _
    $region35: #{tpu_custom_call.1} parent=1 // pred_check_branch
      %205 = sbr.rel (0) target = $region37
    $region36: #{tpu_custom_call.1} parent=1 // pred_region
      %206 = dma.done [#allocation4], 256
    $region37: #{tpu_custom_call.1} parent=1 // pred_fallthru
      _
    %207 = vsyncpa [#allocation3], 1
    %208 = vsyncpa [#allocation6], 1
    %209 = vsyncpa [#allocation4], 1

</llo_original>
